<compile_context>
chip_gen: v6e
topology: v6e:2x2x1
jax: 0.10.0
libtpu: 0.0.40
codegen_flags: <defaults>
</compile_context>

<pallas_src>
import functools
import math

import jax
import jax.numpy as jnp
from jax import lax
from jax.experimental import pallas as pl
from jax.experimental.pallas import tpu as pltpu

BN_EPS = 1e-5       # nn.BatchNorm1d default eps
L2_EPS = 1e-12      # F.normalize default eps


def _round_up(v, m):
    return ((v + m - 1) // m) * m


def _bnneck_kernel(x_ref, gb_ref, fc_ref, feat_ref, logit_ref, *, mm_dtype):
    # x_ref:     (Pb, n, Cp)    Pb parts' features for the whole batch
    # gb_ref:    (Pb, 2, Cp)    f32; row 0 = BN gamma, row 1 = BN beta
    # fc_ref:    (Pb, Cp, K)    classifier weights (native dtype, K unpadded)
    # feat_ref:  (Pb, n, Cp)
    # logit_ref: (Pb, n, Kp)    Kp = K rounded up to 128 (lane-dense store)
    x = x_ref[...].astype(jnp.float32)
    gamma = gb_ref[:, 0:1, :]                               # (Pb, 1, Cp) f32
    beta = gb_ref[:, 1:2, :]                                # (Pb, 1, Cp) f32

    # ---- BatchNorm1d (training mode: biased batch stats over n) in ONE pass:
    #      var = E[x^2] - mean^2, folded into a single scale/shift (rsqrt->EUP).
    inv_n = 1.0 / x.shape[1]
    mean = jnp.sum(x, axis=1, keepdims=True) * inv_n        # (Pb, 1, Cp)
    ex2 = jnp.sum(x * x, axis=1, keepdims=True) * inv_n     # (Pb, 1, Cp)
    var = jnp.maximum(ex2 - mean * mean, 0.0)
    scale = gamma * lax.rsqrt(var + BN_EPS)
    shift = beta - mean * scale
    x_bn = x * scale + shift                                # (Pb, n, Cp)

    # ---- F.normalize(feature, dim=-1): L2 over channels (rsqrt -> EUP).
    f_sq = jnp.sum(x_bn * x_bn, axis=2, keepdims=True)      # (Pb, n, 1)
    feat = x_bn * lax.rsqrt(jnp.maximum(f_sq, L2_EPS * L2_EPS))

    # ---- F.normalize(fc_bin, dim=1): L2 over in-channels.  The big fc block
    #      is never upcast to a persistent f32 copy: only its per-(part, K)
    #      scale is f32; the normalized weights are formed in the matmul dtype.
    w = fc_ref[...]                                         # (Pb, Cp, K) native
    w_sq = jnp.sum(jnp.square(w).astype(jnp.float32), axis=1, keepdims=True)
    w_scale = lax.rsqrt(jnp.maximum(w_sq, L2_EPS * L2_EPS))  # (Pb, 1, K) f32
    w_n = w.astype(mm_dtype) * w_scale.astype(mm_dtype)      # (Pb, Cp, K)

    # Pad K -> Kp inside VMEM (zeros) so the matmul / logits store are lane-dense.
    k = w_n.shape[-1]
    k_pad = logit_ref.shape[-1]
    if k_pad > k:
        w_n = jnp.concatenate(
            [w_n, jnp.zeros(w_n.shape[:-1] + (k_pad - k,), dtype=mm_dtype)],
            axis=-1)

    # ---- per-part matmul on the MXU: (Pb, n, Cp) @ (Pb, Cp, Kp) -> (Pb, n, Kp)
    #      bf16 operands (normalized, |.| <= 1), f32 accumulation.
    logits = jnp.einsum(
        "bnc,bck->bnk",
        feat.astype(mm_dtype),
        w_n,
        preferred_element_type=jnp.float32,
    )

    feat_ref[...] = feat.astype(feat_ref.dtype)
    logit_ref[...] = logits.astype(logit_ref.dtype)


def _vmem_capacity_bytes():
    try:
        return int(pltpu.get_tpu_info().vmem_capacity_bytes)
    except Exception:
        return 64 * 1024 * 1024   # conservative fallback: v7x per-core VMEM


def _choose_pb(p, per_part_bytes, budget_bytes):
    """Largest parts-per-step that fits the budget, keeps >=2 grid steps when
    p>=2 (v7x megacore), and minimizes wasted padded parts."""
    pb_max = max(1, min(p, budget_bytes // max(1, per_part_bytes)))
    if p >= 2:
        pb_max = min(pb_max, math.ceil(p / 2))
    best_pb, best_total = 1, None
    for cand in range(1, pb_max + 1):
        total = _round_up(p, cand)          # parts processed incl. padding
        if best_total is None or total < best_total or (
                total == best_total and cand > best_pb):
            best_pb, best_total = cand, total
    return best_pb


def separate_bn_necks_parts_major(x_pnc, gamma_p, beta_p, fc_bin, *,
                                  matmul_in_bf16=True):
    """Parts-major BNNeck (skips all [n,c,p] layout plumbing).

    x_pnc:   [p, n, c]   gamma_p/beta_p: [p, c]   fc_bin: [p, c, K]
    returns (feature [p, n, c], logits [p, n, K])
    """
    p, n, c = x_pnc.shape
    k = fc_bin.shape[-1]
    dtype = x_pnc.dtype
    mm_dtype = jnp.bfloat16 if matmul_in_bf16 else jnp.float32

    c_pad = _round_up(c, 128)           # lane-dense channel axis
    k_pad = _round_up(k, 128)           # only the logits OUTPUT is K-padded

    # ---- generation-aware VMEM budget (v7x: 64 MiB, v5e/v6e: 128 MiB) -------
    vmem_cap = _vmem_capacity_bytes()
    budget = max(16 << 20, min(int(vmem_cap * 0.7), vmem_cap - (16 << 20)))

    n8 = _round_up(n, 8)                                   # sublane padding
    in_item = jnp.dtype(dtype).itemsize
    fc_item = jnp.dtype(fc_bin.dtype).itemsize
    mm_item = jnp.dtype(mm_dtype).itemsize
    io_bytes = (n8 * c_pad * in_item                       # x block
                + 8 * c_pad * 4                            # gamma/beta (f32)
                + c_pad * k * fc_item                      # fc block (K unpadded)
                + n8 * c_pad * in_item                     # feature out
                + n8 * k_pad * in_item)                    # logits out
    body_bytes = (n8 * c_pad * (4 + 4 + mm_item)           # x_f32, feat_f32, feat_mm
                  + c_pad * (k * 4 + k_pad * mm_item)      # fc square temp + w_n
                  + n8 * k_pad * 4)                        # f32 logits
    per_part_bytes = 2 * io_bytes + body_bytes             # I/O double-buffered

    pb = _choose_pb(p, per_part_bytes, budget)
    p_pad = _round_up(p, pb)
    num_steps = p_pad // pb

    vmem_limit = min(vmem_cap - (8 << 20),
                     max(32 << 20, pb * per_part_bytes + (4 << 20)))
    vmem_limit = int(max(vmem_limit, 16 << 20))

    # ---- pad only when necessary (padding contributes exact zeros) ----------
    need_pad = (p_pad != p) or (c_pad != c)
    x_in = jnp.pad(x_pnc, ((0, p_pad - p), (0, 0), (0, c_pad - c))) if need_pad else x_pnc
    gb = jnp.stack([gamma_p, beta_p], axis=1).astype(jnp.float32)    # [p, 2, c]
    if need_pad:
        gb = jnp.pad(gb, ((0, p_pad - p), (0, 0), (0, c_pad - c)))
    fc_in = jnp.pad(fc_bin, ((0, p_pad - p), (0, c_pad - c), (0, 0))) if need_pad else fc_bin

    kernel = functools.partial(_bnneck_kernel, mm_dtype=mm_dtype)
    feat_p, logits_p = pl.pallas_call(
        kernel,
        out_shape=(
            jax.ShapeDtypeStruct((p_pad, n, c_pad), dtype),
            jax.ShapeDtypeStruct((p_pad, n, k_pad), dtype),
        ),
        grid_spec=pltpu.PrefetchScalarGridSpec(
            num_scalar_prefetch=0,
            grid=(num_steps,),
            in_specs=[
                pl.BlockSpec((pb, n, c_pad), lambda i: (i, 0, 0)),
                pl.BlockSpec((pb, 2, c_pad), lambda i: (i, 0, 0)),
                pl.BlockSpec((pb, c_pad, k), lambda i: (i, 0, 0)),
            ],
            out_specs=[
                pl.BlockSpec((pb, n, c_pad), lambda i: (i, 0, 0)),
                pl.BlockSpec((pb, n, k_pad), lambda i: (i, 0, 0)),
            ],
        ),
        compiler_params=pltpu.CompilerParams(
            dimension_semantics=("parallel",),
            vmem_limit_bytes=vmem_limit,
        ),
    )(x_in, gb, fc_in)

    if need_pad:
        feat_p = feat_p[:p, :, :c]
    if p_pad != p or k_pad != k:
        logits_p = logits_p[:p, :, :k]
    return feat_p, logits_p


def separate_bn_necks(x, gamma, beta, fc_bin, *, matmul_in_bf16=True):
    """PyTorch-layout wrapper.

    x:      [n, c, p]   input features (matches PyTorch forward signature)
    gamma:  [c * p]     BatchNorm1d weight (flattened c-major, p-minor)
    beta:   [c * p]     BatchNorm1d bias
    fc_bin: [p, c, K]   per-part classifier weights
    returns (feature [n, c, p], logits [n, K, p])
    """
    n, c, p = x.shape
    x_pnc = jnp.transpose(x, (2, 0, 1))                    # [p, n, c]
    gamma_p = jnp.transpose(gamma.reshape(c, p), (1, 0))   # [p, c]
    beta_p = jnp.transpose(beta.reshape(c, p), (1, 0))     # [p, c]
    feat_p, logits_p = separate_bn_necks_parts_major(
        x_pnc, gamma_p, beta_p, fc_bin, matmul_in_bf16=matmul_in_bf16)
    feature = jnp.transpose(feat_p, (1, 2, 0))             # [n, c, p]
    logits = jnp.transpose(logits_p, (1, 2, 0))            # [n, K, p]
    return feature, logits


def _reference(x, gamma, beta, fc_bin):
    """Plain-JAX mirror of the PyTorch forward (training-mode BN, f32)."""
    n, c, p = x.shape
    xf = x.reshape(n, c * p)
    mean = jnp.mean(xf, axis=0)
    var = jnp.mean((xf - mean) ** 2, axis=0)
    xf = (xf - mean) / jnp.sqrt(var + BN_EPS) * gamma + beta
    xb = xf.reshape(n, c, p)
    feat = jnp.transpose(xb, (2, 0, 1))                                   # [p, n, c]
    feat = feat / jnp.maximum(
        jnp.linalg.norm(feat, axis=-1, keepdims=True), L2_EPS)
    w = fc_bin / jnp.maximum(
        jnp.linalg.norm(fc_bin, axis=1, keepdims=True), L2_EPS)
    logits = jnp.einsum("pnc,pck->pnk", feat, w)
    return jnp.transpose(feat, (1, 2, 0)), jnp.transpose(logits, (1, 2, 0))


if __name__ == "__main__":
    # small, module-consistent shapes
    n, c, p, class_num = 8, 32, 4, 16

    key = jax.random.PRNGKey(0)
    kx, kw, kg, kb = jax.random.split(key, 4)

    x = jax.random.normal(kx, (n, c, p), dtype=jnp.float32)

    # deterministic parameter init (mirrors the PyTorch __init__):
    #   fc_bin = xavier_uniform(zeros(p, c, class_num))
    fan_in, fan_out = c * class_num, p * class_num
    bound = (6.0 / (fan_in + fan_out)) ** 0.5
    fc_bin = jax.random.uniform(kw, (p, c, class_num), dtype=jnp.float32,
                                minval=-bound, maxval=bound)
    #   BatchNorm1d(c * p): weight=1, bias=0 at init; perturbed slightly so the
    #   gamma/beta folding path is actually exercised.
    gamma = 1.0 + 0.1 * jax.random.normal(kg, (c * p,), dtype=jnp.float32)
    beta = 0.05 * jax.random.normal(kb, (c * p,), dtype=jnp.float32)

    feature, logits = separate_bn_necks(x, gamma, beta, fc_bin)
    jax.block_until_ready((feature, logits))

    ref_feat, ref_logits = _reference(x, gamma, beta, fc_bin)
    assert feature.shape == (n, c, p) and logits.shape == (n, class_num, p)
    # feature path is computed fully in f32
    assert jnp.allclose(feature, ref_feat, atol=1e-4), float(
        jnp.max(jnp.abs(feature - ref_feat)))
    # logits go through a bf16-operand MXU matmul with f32 accumulation
    assert jnp.allclose(logits, ref_logits, atol=1e-2), float(
        jnp.max(jnp.abs(logits - ref_logits)))

    print("KERNEL_OK")
</pallas_src>

<mosaic_0001>
module attributes {stable_mosaic.version = 11 : i64} {
  func.func @_bnneck_kernel(%arg0: i32, %arg1: memref<2x8x128xf32, #tpu.memory_space<vmem>>, %arg2: memref<2x2x128xf32, #tpu.memory_space<vmem>>, %arg3: memref<2x128x16xf32, #tpu.memory_space<vmem>>, %arg4: memref<2x8x128xf32, #tpu.memory_space<vmem>>, %arg5: memref<2x8x128xf32, #tpu.memory_space<vmem>>) attributes {dimension_semantics = [#tpu.dimension_semantics<parallel>], iteration_bounds = array<i64: 2>, scalar_prefetch = 0 : i64, scratch_operands = 0 : i64, tpu.core_type = #tpu.core_type<tc>, window_params = [{transform_indices = @transform_0, window_bounds = array<i64: 2, 8, 128>}, {transform_indices = @transform_1, window_bounds = array<i64: 2, 2, 128>}, {transform_indices = @transform_2, window_bounds = array<i64: 2, 128, 16>}, {transform_indices = @transform_3, window_bounds = array<i64: 2, 8, 128>}, {transform_indices = @transform_4, window_bounds = array<i64: 2, 8, 128>}]} {
    %c0 = arith.constant 0 : index
    %c0_0 = arith.constant 0 : index
    %c0_1 = arith.constant 0 : index
    %0 = vector.load %arg1[%c0, %c0_0, %c0_1] : memref<2x8x128xf32, #tpu.memory_space<vmem>>, vector<2x8x128xf32>
    %c0_2 = arith.constant 0 : index
    %c0_3 = arith.constant 0 : index
    %c0_4 = arith.constant 0 : index
    %1 = vector.load %arg2[%c0_2, %c0_3, %c0_4] : memref<2x2x128xf32, #tpu.memory_space<vmem>>, vector<2x1x128xf32>
    %c0_5 = arith.constant 0 : index
    %c1 = arith.constant 1 : index
    %c0_6 = arith.constant 0 : index
    %2 = vector.load %arg2[%c0_5, %c1, %c0_6] : memref<2x2x128xf32, #tpu.memory_space<vmem>>, vector<2x1x128xf32>
    %cst = arith.constant dense<0.000000e+00> : vector<2x128xf32>
    %3 = vector.multi_reduction <add>, %0, %cst [1] : vector<2x8x128xf32> to vector<2x128xf32>
    %4 = vector.shape_cast %3 : vector<2x128xf32> to vector<2x1x128xf32>
    %cst_7 = arith.constant 1.250000e-01 : f32
    %5 = vector.broadcast %cst_7 : f32 to vector<2x1x128xf32>
    %6 = arith.mulf %4, %5 : vector<2x1x128xf32>
    %7 = arith.mulf %0, %0 : vector<2x8x128xf32>
    %cst_8 = arith.constant dense<0.000000e+00> : vector<2x128xf32>
    %8 = vector.multi_reduction <add>, %7, %cst_8 [1] : vector<2x8x128xf32> to vector<2x128xf32>
    %9 = vector.shape_cast %8 : vector<2x128xf32> to vector<2x1x128xf32>
    %cst_9 = arith.constant 1.250000e-01 : f32
    %10 = vector.broadcast %cst_9 : f32 to vector<2x1x128xf32>
    %11 = arith.mulf %9, %10 : vector<2x1x128xf32>
    %12 = arith.mulf %6, %6 : vector<2x1x128xf32>
    %13 = arith.subf %11, %12 : vector<2x1x128xf32>
    %cst_10 = arith.constant 0.000000e+00 : f32
    %14 = vector.broadcast %cst_10 : f32 to vector<2x1x128xf32>
    %15 = arith.maximumf %13, %14 : vector<2x1x128xf32>
    %cst_11 = arith.constant 9.99999974E-6 : f32
    %16 = vector.broadcast %cst_11 : f32 to vector<2x1x128xf32>
    %17 = arith.addf %15, %16 : vector<2x1x128xf32>
    %18 = math.rsqrt %17 : vector<2x1x128xf32>
    %19 = arith.mulf %1, %18 : vector<2x1x128xf32>
    %20 = arith.mulf %6, %19 : vector<2x1x128xf32>
    %21 = arith.subf %2, %20 : vector<2x1x128xf32>
    %22 = vector.broadcast %19 : vector<2x1x128xf32> to vector<2x8x128xf32>
    %23 = arith.mulf %0, %22 : vector<2x8x128xf32>
    %24 = vector.broadcast %21 : vector<2x1x128xf32> to vector<2x8x128xf32>
    %25 = arith.addf %23, %24 : vector<2x8x128xf32>
    %26 = arith.mulf %25, %25 : vector<2x8x128xf32>
    %cst_12 = arith.constant dense<0.000000e+00> : vector<2x8xf32>
    %27 = vector.multi_reduction <add>, %26, %cst_12 [2] : vector<2x8x128xf32> to vector<2x8xf32>
    %28 = vector.shape_cast %27 : vector<2x8xf32> to vector<2x8x1xf32>
    %cst_13 = arith.constant 1.000000e-24 : f32
    %29 = vector.broadcast %cst_13 : f32 to vector<2x8x1xf32>
    %30 = arith.maximumf %28, %29 : vector<2x8x1xf32>
    %31 = math.rsqrt %30 : vector<2x8x1xf32>
    %32 = vector.broadcast %31 : vector<2x8x1xf32> to vector<2x8x128xf32>
    %33 = arith.mulf %25, %32 : vector<2x8x128xf32>
    %c0_14 = arith.constant 0 : index
    %c0_15 = arith.constant 0 : index
    %c0_16 = arith.constant 0 : index
    %34 = vector.load %arg3[%c0_14, %c0_15, %c0_16] : memref<2x128x16xf32, #tpu.memory_space<vmem>>, vector<2x128x16xf32>
    %35 = arith.mulf %34, %34 : vector<2x128x16xf32>
    %cst_17 = arith.constant dense<0.000000e+00> : vector<2x16xf32>
    %36 = vector.multi_reduction <add>, %35, %cst_17 [1] : vector<2x128x16xf32> to vector<2x16xf32>
    %37 = vector.shape_cast %36 : vector<2x16xf32> to vector<2x1x16xf32>
    %cst_18 = arith.constant 1.000000e-24 : f32
    %38 = vector.broadcast %cst_18 : f32 to vector<2x1x16xf32>
    %39 = arith.maximumf %37, %38 : vector<2x1x16xf32>
    %40 = math.rsqrt %39 : vector<2x1x16xf32>
    %41 = arith.truncf %34 : vector<2x128x16xf32> to vector<2x128x16xbf16>
    %42 = arith.truncf %40 : vector<2x1x16xf32> to vector<2x1x16xbf16>
    %43 = vector.broadcast %42 : vector<2x1x16xbf16> to vector<2x128x16xbf16>
    %44 = arith.mulf %41, %43 : vector<2x128x16xbf16>
    %cst_19 = arith.constant 0.000000e+00 : bf16
    %45 = vector.broadcast %cst_19 : bf16 to vector<2x128x112xbf16>
    %46 = tpu.concatenate %44, %45 in 2 : vector<2x128x16xbf16>, vector<2x128x112xbf16> -> vector<2x128x128xbf16>
    %47 = arith.truncf %33 : vector<2x8x128xf32> to vector<2x8x128xbf16>
    "tpu.trace_start"() <{level = 10 : i32, message = "bnc,bck->bnk"}> : () -> ()
    %cst_20 = arith.constant dense<0.000000e+00> : vector<2x8x128xf32>
    %48 = tpu.matmul %47, %46, %cst_20 {dimension_numbers = #tpu.dot_dimension_numbers<[2], [1], [1], [2], [0, 0, 0, 1, 1, 2], [0], [0]>} : vector<2x8x128xbf16>, vector<2x128x128xbf16>, vector<2x8x128xf32> -> vector<2x8x128xf32>
    "tpu.trace_stop"() : () -> ()
    %c0_21 = arith.constant 0 : index
    %c0_22 = arith.constant 0 : index
    %c0_23 = arith.constant 0 : index
    %49 = vector.load %arg4[%c0_21, %c0_22, %c0_23] : memref<2x8x128xf32, #tpu.memory_space<vmem>>, vector<2x8x128xf32>
    tpu.vector_store %arg4[%c0_21, %c0_22, %c0_23], %33 {strides = array<i32>} : memref<2x8x128xf32, #tpu.memory_space<vmem>>, vector<2x8x128xf32>,
    %c0_24 = arith.constant 0 : index
    %c0_25 = arith.constant 0 : index
    %c0_26 = arith.constant 0 : index
    %50 = vector.load %arg5[%c0_24, %c0_25, %c0_26] : memref<2x8x128xf32, #tpu.memory_space<vmem>>, vector<2x8x128xf32>
    tpu.vector_store %arg5[%c0_24, %c0_25, %c0_26], %48 {strides = array<i32>} : memref<2x8x128xf32, #tpu.memory_space<vmem>>, vector<2x8x128xf32>,
    return
  }
  func.func @transform_0(%arg0: i32) -> (i32, i32, i32) {
    %c0_i32 = arith.constant 0 : i32
    %c0_i32_0 = arith.constant 0 : i32
    %c0_i32_1 = arith.constant 0 : i32
    return %arg0, %c0_i32, %c0_i32_0 : i32, i32, i32
  }
  func.func @transform_1(%arg0: i32) -> (i32, i32, i32) {
    %c0_i32 = arith.constant 0 : i32
    %c0_i32_0 = arith.constant 0 : i32
    %c0_i32_1 = arith.constant 0 : i32
    return %arg0, %c0_i32, %c0_i32_0 : i32, i32, i32
  }
  func.func @transform_2(%arg0: i32) -> (i32, i32, i32) {
    %c0_i32 = arith.constant 0 : i32
    %c0_i32_0 = arith.constant 0 : i32
    %c0_i32_1 = arith.constant 0 : i32
    return %arg0, %c0_i32, %c0_i32_0 : i32, i32, i32
  }
  func.func @transform_3(%arg0: i32) -> (i32, i32, i32) {
    %c0_i32 = arith.constant 0 : i32
    %c0_i32_0 = arith.constant 0 : i32
    %c0_i32_1 = arith.constant 0 : i32
    return %arg0, %c0_i32, %c0_i32_0 : i32, i32, i32
  }
  func.func @transform_4(%arg0: i32) -> (i32, i32, i32) {
    %c0_i32 = arith.constant 0 : i32
    %c0_i32_0 = arith.constant 0 : i32
    %c0_i32_1 = arith.constant 0 : i32
    return %arg0, %c0_i32, %c0_i32_0 : i32, i32, i32
  }
}

</mosaic_0001>

<llo_original>
// kernel: tpu_custom_call.1
$region0: #{tpu_custom_call.1}
  #allocation0 [shape = 'u32[]', space=smem, size = 0x4, offset = 0x4, fixed_abs, tag = 'smem constant byte address 0x4 - core index']
  #allocation1 [shape = 'u32[144,128]{1,0:T(1,128)}', space=vmem, size = 0x12000, scoped, tag = 'internal scratch']
  %s0 = inlined_call_operand.vmem [shape: f32[4,8,128], index: 0, kind: input, shape index: {}]
  %s1 = inlined_call_operand.vmem [shape: f32[4,2,128], index: 1, kind: input, shape index: {}]
  %s2 = inlined_call_operand.vmem [shape: f32[4,128,16], index: 2, kind: input, shape index: {}]
  %s3 = inlined_call_operand.hbm [shape: f32[4,8,128], index: 3, kind: output, shape index: {0}]
  %s4 = inlined_call_operand.hbm [shape: f32[4,8,128], index: 4, kind: output, shape index: {1}]
  %5 = xla_tuple %s3, %s4
  %s6 = sld [smem:[#allocation0]]
  $region53: #{tpu_custom_call.1} parent=0
    _
  %s8 = ssub.s32 1, %s6
  %s9 = scalar_select 0, %s8, %s6
  $region1: #{tpu_custom_call.1} parent=0
    #allocation2 [shape = 'u8[16384]{0}', space=vmem, size = 0x4000, scoped, tag = 'output window, operand 0']
    #allocation3 [shape = 's32[2]{0}', space=sflag, size = 0x8, scoped, tag = 'scoped memory for tpu_custom_call.1']
    #allocation4 [shape = 'u8[16384]{0}', space=vmem, size = 0x4000, scoped, tag = 'output window, operand 1']
    #allocation5 [shape = 's32[2]{0}', space=sflag, size = 0x8, scoped, tag = 'scoped memory for tpu_custom_call.1']
    %10 = vsyncpa [#allocation3], 0
    %s11 = scalar_lea.sflag [#allocation3], 1
    %12 = vsyncpa %s11, 0
    %13 = vsyncpa [#allocation5], 0
    %s14 = scalar_lea.sflag [#allocation5], 1
    %15 = vsyncpa %s14, 0
    loop: start=0, step=1, limit=4
    $region2: #{tpu_custom_call.1} parent=1 // loop_pre_header
      _
    $region3: #{tpu_custom_call.1} parent=1 // loop_header
      %s17 = sphi 0, %s21
      %p18 = scmp.ge.s32.totalorder %s17, 4
      %s27 = sphi 0, %s29
      %s30 = sphi 0, %s27
      %s31 = sphi 0, %s30
      %s47 = sphi 0, %s31
      %s53 = sphi 0, %s55
      %s56 = sphi 0, %s53
      %s57 = sphi 0, %s56
      %s73 = sphi 0, %s57
      %s79 = sphi 0, %s81
      %s82 = sphi 0, %s79
      %s83 = sphi 0, %s82
      %s99 = sphi 0, %s83
      %s105 = sphi 0, %s107
      %s108 = sphi 0, %s105
      %s109 = sphi 0, %s108
      %s125 = sphi 0, %s109
      %s131 = sphi 0, %s133
      %s134 = sphi 0, %s131
      %s135 = sphi 0, %s134
      %s151 = sphi 0, %s135
    $region4: #{tpu_custom_call.1} parent=1 // loop_header_branch
      %20 = sbr.rel (%p18) target = $region8
    $region5: #{tpu_custom_call.1} parent=1 // loop_body
      %s22 = ssub.s32 %s17, 1
      %s23 = ssub.s32 %s17, 2
      %s24 = sadd.s32 %s17, 1
      %s25 = ssub.s32 %s17, %s24
      %p26 = scmp.eq.s32.totalorder %s25, 0
      %s28 = sadd.s32 %s27, 1
      %s29 = scalar_select %p26, %s27, %s28
      %p32 = pneg %p26
      %p33 = scmp.eq.s32.totalorder %s17, 1
      %p34 = por %p32, %p33
      %p35 = scmp.ne.s32.totalorder %s27, %s30
      %p36 = scmp.eq.s32.totalorder %s17, 0
      %p37 = por %p35, %p36
      %p38 = scmp.ne.s32.totalorder %s27, %s30
      %p39 = scmp.eq.s32.totalorder %s22, 1
      %p40 = por %p38, %p39
      %p41 = scmp.ne.s32.totalorder %s30, %s31
      %p42 = scmp.eq.s32.totalorder %s22, 0
      %p43 = por %p41, %p42
      %p44 = scmp.ne.s32.totalorder %s30, %s31
      %p45 = scmp.eq.s32.totalorder %s23, 1
      %p46 = por %p44, %p45
      %p48 = scmp.ne.s32.totalorder %s31, %s47
      %p49 = scmp.eq.s32.totalorder %s23, 0
      %p50 = por %p48, %p49
      %s51 = ssub.s32 %s17, %s24
      %p52 = scmp.eq.s32.totalorder %s51, 0
      %s54 = sadd.s32 %s53, 1
      %s55 = scalar_select %p52, %s53, %s54
      %p58 = pneg %p52
      %p59 = scmp.eq.s32.totalorder %s17, 1
      %p60 = por %p58, %p59
      %p61 = scmp.ne.s32.totalorder %s53, %s56
      %p62 = scmp.eq.s32.totalorder %s17, 0
      %p63 = por %p61, %p62
      %p64 = scmp.ne.s32.totalorder %s53, %s56
      %p65 = scmp.eq.s32.totalorder %s22, 1
      %p66 = por %p64, %p65
      %p67 = scmp.ne.s32.totalorder %s56, %s57
      %p68 = scmp.eq.s32.totalorder %s22, 0
      %p69 = por %p67, %p68
      %p70 = scmp.ne.s32.totalorder %s56, %s57
      %p71 = scmp.eq.s32.totalorder %s23, 1
      %p72 = por %p70, %p71
      %p74 = scmp.ne.s32.totalorder %s57, %s73
      %p75 = scmp.eq.s32.totalorder %s23, 0
      %p76 = por %p74, %p75
      %s77 = ssub.s32 %s17, %s24
      %p78 = scmp.eq.s32.totalorder %s77, 0
      %s80 = sadd.s32 %s79, 1
      %s81 = scalar_select %p78, %s79, %s80
      %p84 = pneg %p78
      %p85 = scmp.eq.s32.totalorder %s17, 1
      %p86 = por %p84, %p85
      %p87 = scmp.ne.s32.totalorder %s79, %s82
      %p88 = scmp.eq.s32.totalorder %s17, 0
      %p89 = por %p87, %p88
      %p90 = scmp.ne.s32.totalorder %s79, %s82
      %p91 = scmp.eq.s32.totalorder %s22, 1
      %p92 = por %p90, %p91
      %p93 = scmp.ne.s32.totalorder %s82, %s83
      %p94 = scmp.eq.s32.totalorder %s22, 0
      %p95 = por %p93, %p94
      %p96 = scmp.ne.s32.totalorder %s82, %s83
      %p97 = scmp.eq.s32.totalorder %s23, 1
      %p98 = por %p96, %p97
      %p100 = scmp.ne.s32.totalorder %s83, %s99
      %p101 = scmp.eq.s32.totalorder %s23, 0
      %p102 = por %p100, %p101
      %s103 = ssub.s32 %s17, %s24
      %p104 = scmp.eq.s32.totalorder %s103, 0
      %s106 = sadd.s32 %s105, 1
      %s107 = scalar_select %p104, %s105, %s106
      %p110 = pneg %p104
      %p111 = scmp.eq.s32.totalorder %s17, 1
      %p112 = por %p110, %p111
      %p113 = scmp.ne.s32.totalorder %s105, %s108
      %p114 = scmp.eq.s32.totalorder %s17, 0
      %p115 = por %p113, %p114
      %p116 = scmp.ne.s32.totalorder %s105, %s108
      %p117 = scmp.eq.s32.totalorder %s22, 1
      %p118 = por %p116, %p117
      %p119 = scmp.ne.s32.totalorder %s108, %s109
      %p120 = scmp.eq.s32.totalorder %s22, 0
      %p121 = por %p119, %p120
      %p122 = scmp.ne.s32.totalorder %s108, %s109
      %p123 = scmp.eq.s32.totalorder %s23, 1
      %p124 = por %p122, %p123
      %p126 = scmp.ne.s32.totalorder %s109, %s125
      %p127 = scmp.eq.s32.totalorder %s23, 0
      %p128 = por %p126, %p127
      %s129 = ssub.s32 %s17, %s24
      %p130 = scmp.eq.s32.totalorder %s129, 0
      %s132 = sadd.s32 %s131, 1
      %s133 = scalar_select %p130, %s131, %s132
      %p136 = pneg %p130
      %p137 = scmp.eq.s32.totalorder %s17, 1
      %p138 = por %p136, %p137
      %p139 = scmp.ne.s32.totalorder %s131, %s134
      %p140 = scmp.eq.s32.totalorder %s17, 0
      %p141 = por %p139, %p140
      %p142 = scmp.ne.s32.totalorder %s131, %s134
      %p143 = scmp.eq.s32.totalorder %s22, 1
      %p144 = por %p142, %p143
      %p145 = scmp.ne.s32.totalorder %s134, %s135
      %p146 = scmp.eq.s32.totalorder %s22, 0
      %p147 = por %p145, %p146
      %p148 = scmp.ne.s32.totalorder %s134, %s135
      %p149 = scmp.eq.s32.totalorder %s23, 1
      %p150 = por %p148, %p149
      %p152 = scmp.ne.s32.totalorder %s135, %s151
      %p153 = scmp.eq.s32.totalorder %s23, 0
      %p154 = por %p152, %p153
      %p155 = scmp.le.s32.totalorder 1, %s17
      %p156 = scmp.lt.s32.totalorder %s17, 3
      %p157 = pnand %p155, %p156
      %p158 = pneg %p157
      // Predicated region
      $region9: #{tpu_custom_call.1} parent=5 // pred_check
        _
      $region10: #{tpu_custom_call.1} parent=5 // pred_check_branch
        %160 = sbr.rel (%p157) target = $region12
      $region11: #{tpu_custom_call.1} parent=5 // pred_region
        %s161 = ssub.s32 %s17, 1
      $region12: #{tpu_custom_call.1} parent=5 // pred_fallthru
        _
      %p162 = scmp.lt.s32.totalorder %s17, 2
      // Predicated region
      $region13: #{tpu_custom_call.1} parent=5 // pred_check
        %p163 = pneg %p162
      $region14: #{tpu_custom_call.1} parent=5 // pred_check_branch
        %165 = sbr.rel (%p163) target = $region16
      $region15: #{tpu_custom_call.1} parent=5 // pred_region
        // Predicated region
        $region17: #{tpu_custom_call.1} parent=15 // pred_check
          %p166 = pneg %p37
        $region18: #{tpu_custom_call.1} parent=15 // pred_check_branch
          %168 = sbr.rel (%p166) target = $region20
        $region19: #{tpu_custom_call.1} parent=15 // pred_region
          %s169 = smul.u32 2, %s17
          %p170 = scmp.lt.s32.totalorder %s169, 3
          %s171 = scalar_select %p170, %s169, 3
          %s172 = smul.addr %s171, 8
          %s173 = scalar_lea.vmem %s0, %s172
          %s174 = smul.u32 2, %s17
        $region20: #{tpu_custom_call.1} parent=15 // pred_fallthru
          _
        // Predicated region
        $region21: #{tpu_custom_call.1} parent=15 // pred_check
          %p175 = pneg %p63
        $region22: #{tpu_custom_call.1} parent=15 // pred_check_branch
          %177 = sbr.rel (%p175) target = $region24
        $region23: #{tpu_custom_call.1} parent=15 // pred_region
          %s178 = smul.u32 2, %s17
          %p179 = scmp.lt.s32.totalorder %s178, 3
          %s180 = scalar_select %p179, %s178, 3
          %s181 = smul.addr %s180, 2
          %s182 = scalar_lea.vmem %s1, %s181
          %s183 = smul.u32 2, %s17
        $region24: #{tpu_custom_call.1} parent=15 // pred_fallthru
          _
        // Predicated region
        $region25: #{tpu_custom_call.1} parent=15 // pred_check
          %p184 = pneg %p89
        $region26: #{tpu_custom_call.1} parent=15 // pred_check_branch
          %186 = sbr.rel (%p184) target = $region28
        $region27: #{tpu_custom_call.1} parent=15 // pred_region
          %s187 = smul.u32 2, %s17
          %p188 = scmp.lt.s32.totalorder %s187, 3
          %s189 = scalar_select %p188, %s187, 3
          %s190 = smul.addr %s189, 16
          %s191 = smul.addr %s190, 8
          %s192 = scalar_lea.vmem %s2, %s191
          %s193 = smul.u32 2, %s17
        $region28: #{tpu_custom_call.1} parent=15 // pred_fallthru
          _
      $region16: #{tpu_custom_call.1} parent=5 // pred_fallthru
        _
      %p194 = scmp.le.s32.totalorder 1, %s17
      %p195 = scmp.lt.s32.totalorder %s17, 3
      %p196 = pnand %p194, %p195
      %p197 = pneg %p196
      // Predicated region
      $region29: #{tpu_custom_call.1} parent=5 // pred_check
        _
      $region30: #{tpu_custom_call.1} parent=5 // pred_check_branch
        %199 = sbr.rel (%p196) target = $region32
      $region31: #{tpu_custom_call.1} parent=5 // pred_region
        %s200 = ssub.s32 %s17, 1
        %s201 = smul.u32 2, %s22
        %p202 = scmp.lt.s32.totalorder %s201, 3
        %s203 = scalar_select %p202, %s201, 3
        %s204 = smul.addr %s203, 8
        %s205 = scalar_lea.vmem %s0, %s204
        %p206 = pneg %p43
        %p207 = pneg %p40
        %s208 = smul.u32 2, %s22
        %p209 = scmp.lt.s32.totalorder %s208, 3
        %s210 = scalar_select %p209, %s208, 3
        %s211 = smul.addr %s210, 2
        %s212 = scalar_lea.vmem %s1, %s211
        %p213 = pneg %p69
        %p214 = pneg %p66
        %s215 = smul.u32 2, %s22
        %p216 = scmp.lt.s32.totalorder %s215, 3
        %s217 = scalar_select %p216, %s215, 3
        %s218 = smul.addr %s217, 16
        %s219 = smul.addr %s218, 8
        %s220 = scalar_lea.vmem %s2, %s219
        %p221 = pneg %p95
        %p222 = pneg %p92
        %p223 = pneg %p121
        %p224 = pneg %p118
        %s225 = sand.u32 %s108, 1
        %s226 = scalar_lea.sflag [#allocation3], %s225
        %s227 = sand.u32 %s108, 1
        %s228 = smul.addr %s227, 16
        %s229 = scalar_lea.vmem [#allocation2], %s228
        %p230 = pneg %p147
        %p231 = pneg %p144
        %s232 = sand.u32 %s134, 1
        %s233 = scalar_lea.sflag [#allocation5], %s232
        %s234 = sand.u32 %s134, 1
        %s235 = smul.addr %s234, 16
        %s236 = scalar_lea.vmem [#allocation4], %s235
        %s237 = smul.u32 2, %s22
        %p238 = scmp.lt.s32.totalorder %s237, 3
        %s239 = scalar_select %p238, %s237, 3
        %s240 = smul.addr %s239, 8
        %s241 = scalar_lea.vmem %s0, %s240
        %s242 = smul.u32 2, %s22
        %s243 = smul.u32 2, %s22
        %p244 = scmp.lt.s32.totalorder %s243, 3
        %s245 = scalar_select %p244, %s243, 3
        %s246 = smul.addr %s245, 2
        %s247 = scalar_lea.vmem %s1, %s246
        %s248 = smul.u32 2, %s22
        %s249 = smul.u32 2, %s22
        %p250 = scmp.lt.s32.totalorder %s249, 3
        %s251 = scalar_select %p250, %s249, 3
        %s252 = smul.addr %s251, 16
        %s253 = smul.addr %s252, 8
        %s254 = scalar_lea.vmem %s2, %s253
        %s255 = smul.u32 2, %s22
        %s256 = smul.u32 2, %s22
        %s257 = smul.u32 2, %s22
        %v259 = vld [vmem:[%s241] sm:$0xff]
        %v260 = vld [vmem:[%s241 + $0x8] sm:$0xff]
        %v261 = vld [vmem:[%s247] sm:$0x1]
        %v262 = vld [vmem:[%s247 + $0x2] sm:$0x1]
        %v263 = vld [vmem:[%s247 + $0x1] sm:$0x1]
        %v264 = vld [vmem:[%s247 + $0x3] sm:$0x1]
        %v265 = vrot.slane %v259, 4
        %v266 = vadd.f32 %v259, %v265
        %v267 = vrot.slane %v266, 2
        %v268 = vadd.f32 %v266, %v267
        %v269 = vrot.slane %v268, 1
        %v270 = vadd.f32 %v268, %v269
        %v271 = vrot.slane %v260, 4
        %v272 = vadd.f32 %v260, %v271
        %v273 = vrot.slane %v272, 2
        %v274 = vadd.f32 %v272, %v273
        %v275 = vrot.slane %v274, 1
        %v276 = vadd.f32 %v274, %v275
        %v277 = vmul.f32 %v270, 0.125
        %v278 = vmul.f32 %v276, 0.125
        %v279 = vmul.f32 %v259, %v259
        %v280 = vmul.f32 %v260, %v260
        %v281 = vrot.slane %v279, 4
        %v282 = vadd.f32 %v279, %v281
        %v283 = vrot.slane %v282, 2
        %v284 = vadd.f32 %v282, %v283
        %v285 = vrot.slane %v284, 1
        %v286 = vadd.f32 %v284, %v285
        %v287 = vrot.slane %v280, 4
        %v288 = vadd.f32 %v280, %v287
        %v289 = vrot.slane %v288, 2
        %v290 = vadd.f32 %v288, %v289
        %v291 = vrot.slane %v290, 1
        %v292 = vadd.f32 %v290, %v291
        %v293 = vmul.f32 %v286, 0.125
        %v294 = vmul.f32 %v292, 0.125
        %v295 = vmul.f32 %v277, %v277
        %v296 = vmul.f32 %v278, %v278
        %v297 = vsub.f32 %v293, %v295
        %v298 = vsub.f32 %v294, %v296
        %v299 = vmax.f32 %v297, 0.0
        %v300 = vmax.f32 %v298, 0.0
        %v301 = vadd.f32 %v299, 1e-05
        %v302 = vadd.f32 %v300, 1e-05
        %v303 = vrsqrt.pop %v301
        %v304 = vrsqrt.pop %v302
        %v305 = vmul.f32 %v261, %v303
        %v306 = vmul.f32 %v262, %v304
        %v307 = vmul.f32 %v277, %v305
        %v308 = vmul.f32 %v278, %v306
        %v309 = vsub.f32 %v263, %v307
        %v310 = vsub.f32 %v264, %v308
        %v311 = vlaneseq
        %v312 = vshrl.u32 %v311, 7
        %v313 = vsub.s32 0, %v312
        %v314 = vrot.slane %v305, %v313
        %v315 = vlaneseq
        %v316 = vshrl.u32 %v315, 7
        %v317 = vsub.s32 0, %v316
        %v318 = vrot.slane %v306, %v317
        %v319 = vmul.f32 %v259, %v314
        %v320 = vmul.f32 %v260, %v318
        %v321 = vlaneseq
        %v322 = vshrl.u32 %v321, 7
        %v323 = vsub.s32 0, %v322
        %v324 = vrot.slane %v309, %v323
        %v325 = vlaneseq
        %v326 = vshrl.u32 %v325, 7
        %v327 = vsub.s32 0, %v326
        %v328 = vrot.slane %v310, %v327
        %v329 = vadd.f32 %v319, %v324
        %v330 = vadd.f32 %v320, %v328
        %v331 = vmul.f32 %v329, %v329
        %v332 = vmul.f32 %v330, %v330
        %333 = vadd.xlane.f32.xlu0 %v331
        %v334 = vpop.xlane.xlu0 %333
        %335 = vadd.xlane.f32.xlu0 %v332
        %v336 = vpop.xlane.xlu0 %335
        %v337 = vmax.f32 %v334, 1e-24
        %v338 = vmax.f32 %v336, 1e-24
        %v339 = vrsqrt.pop %v337
        %v340 = vrsqrt.pop %v338
        %v341 = vmul.f32 %v329, %v339
        %v342 = vmul.f32 %v330, %v340
        %v343 = vld [vmem:[%s254] sm:$0xff]
        %v344 = vld [vmem:[%s254 + $0x8] sm:$0xff]
        %v345 = vld [vmem:[%s254 + $0x10] sm:$0xff]
        %v346 = vld [vmem:[%s254 + $0x18] sm:$0xff]
        %v347 = vld [vmem:[%s254 + $0x20] sm:$0xff]
        %v348 = vld [vmem:[%s254 + $0x28] sm:$0xff]
        %v349 = vld [vmem:[%s254 + $0x30] sm:$0xff]
        %v350 = vld [vmem:[%s254 + $0x38] sm:$0xff]
        %v351 = vld [vmem:[%s254 + $0x40] sm:$0xff]
        %v352 = vld [vmem:[%s254 + $0x48] sm:$0xff]
        %v353 = vld [vmem:[%s254 + $0x50] sm:$0xff]
        %v354 = vld [vmem:[%s254 + $0x58] sm:$0xff]
        %v355 = vld [vmem:[%s254 + $0x60] sm:$0xff]
        %v356 = vld [vmem:[%s254 + $0x68] sm:$0xff]
        %v357 = vld [vmem:[%s254 + $0x70] sm:$0xff]
        %v358 = vld [vmem:[%s254 + $0x78] sm:$0xff]
        %v359 = vld [vmem:[%s254 + $0x80] sm:$0xff]
        %v360 = vld [vmem:[%s254 + $0x88] sm:$0xff]
        %v361 = vld [vmem:[%s254 + $0x90] sm:$0xff]
        %v362 = vld [vmem:[%s254 + $0x98] sm:$0xff]
        %v363 = vld [vmem:[%s254 + $0xa0] sm:$0xff]
        %v364 = vld [vmem:[%s254 + $0xa8] sm:$0xff]
        %v365 = vld [vmem:[%s254 + $0xb0] sm:$0xff]
        %v366 = vld [vmem:[%s254 + $0xb8] sm:$0xff]
        %v367 = vld [vmem:[%s254 + $0xc0] sm:$0xff]
        %v368 = vld [vmem:[%s254 + $0xc8] sm:$0xff]
        %v369 = vld [vmem:[%s254 + $0xd0] sm:$0xff]
        %v370 = vld [vmem:[%s254 + $0xd8] sm:$0xff]
        %v371 = vld [vmem:[%s254 + $0xe0] sm:$0xff]
        %v372 = vld [vmem:[%s254 + $0xe8] sm:$0xff]
        %v373 = vld [vmem:[%s254 + $0xf0] sm:$0xff]
        %v374 = vld [vmem:[%s254 + $0xf8] sm:$0xff]
        %v375 = vmul.f32 %v343, %v343
        %v376 = vmul.f32 %v344, %v344
        %v377 = vmul.f32 %v345, %v345
        %v378 = vmul.f32 %v346, %v346
        %v379 = vmul.f32 %v347, %v347
        %v380 = vmul.f32 %v348, %v348
        %v381 = vmul.f32 %v349, %v349
        %v382 = vmul.f32 %v350, %v350
        %v383 = vmul.f32 %v351, %v351
        %v384 = vmul.f32 %v352, %v352
        %v385 = vmul.f32 %v353, %v353
        %v386 = vmul.f32 %v354, %v354
        %v387 = vmul.f32 %v355, %v355
        %v388 = vmul.f32 %v356, %v356
        %v389 = vmul.f32 %v357, %v357
        %v390 = vmul.f32 %v358, %v358
        %v391 = vmul.f32 %v359, %v359
        %v392 = vmul.f32 %v360, %v360
        %v393 = vmul.f32 %v361, %v361
        %v394 = vmul.f32 %v362, %v362
        %v395 = vmul.f32 %v363, %v363
        %v396 = vmul.f32 %v364, %v364
        %v397 = vmul.f32 %v365, %v365
        %v398 = vmul.f32 %v366, %v366
        %v399 = vmul.f32 %v367, %v367
        %v400 = vmul.f32 %v368, %v368
        %v401 = vmul.f32 %v369, %v369
        %v402 = vmul.f32 %v370, %v370
        %v403 = vmul.f32 %v371, %v371
        %v404 = vmul.f32 %v372, %v372
        %v405 = vmul.f32 %v373, %v373
        %v406 = vmul.f32 %v374, %v374
        %vm407 = vcmask 130048
        %v408 = vsel %vm407, %v375, 0.0
        %v409 = vsel %vm407, %v376, 0.0
        %v410 = vadd.f32 %v408, %v409
        %v411 = vsel %vm407, %v377, 0.0
        %v412 = vadd.f32 %v410, %v411
        %v413 = vsel %vm407, %v378, 0.0
        %v414 = vadd.f32 %v412, %v413
        %v415 = vsel %vm407, %v379, 0.0
        %v416 = vadd.f32 %v414, %v415
        %v417 = vsel %vm407, %v380, 0.0
        %v418 = vadd.f32 %v416, %v417
        %v419 = vsel %vm407, %v381, 0.0
        %v420 = vadd.f32 %v418, %v419
        %v421 = vsel %vm407, %v382, 0.0
        %v422 = vadd.f32 %v420, %v421
        %v423 = vsel %vm407, %v383, 0.0
        %v424 = vadd.f32 %v422, %v423
        %v425 = vsel %vm407, %v384, 0.0
        %v426 = vadd.f32 %v424, %v425
        %v427 = vsel %vm407, %v385, 0.0
        %v428 = vadd.f32 %v426, %v427
        %v429 = vsel %vm407, %v386, 0.0
        %v430 = vadd.f32 %v428, %v429
        %v431 = vsel %vm407, %v387, 0.0
        %v432 = vadd.f32 %v430, %v431
        %v433 = vsel %vm407, %v388, 0.0
        %v434 = vadd.f32 %v432, %v433
        %v435 = vsel %vm407, %v389, 0.0
        %v436 = vadd.f32 %v434, %v435
        %v437 = vsel %vm407, %v390, 0.0
        %v438 = vadd.f32 %v436, %v437
        %v439 = vrot.slane %v438, 4
        %v440 = vadd.f32 %v438, %v439
        %v441 = vrot.slane %v440, 2
        %v442 = vadd.f32 %v440, %v441
        %v443 = vrot.slane %v442, 1
        %v444 = vadd.f32 %v442, %v443
        %v445 = vsel %vm407, %v391, 0.0
        %v446 = vsel %vm407, %v392, 0.0
        %v447 = vadd.f32 %v445, %v446
        %v448 = vsel %vm407, %v393, 0.0
        %v449 = vadd.f32 %v447, %v448
        %v450 = vsel %vm407, %v394, 0.0
        %v451 = vadd.f32 %v449, %v450
        %v452 = vsel %vm407, %v395, 0.0
        %v453 = vadd.f32 %v451, %v452
        %v454 = vsel %vm407, %v396, 0.0
        %v455 = vadd.f32 %v453, %v454
        %v456 = vsel %vm407, %v397, 0.0
        %v457 = vadd.f32 %v455, %v456
        %v458 = vsel %vm407, %v398, 0.0
        %v459 = vadd.f32 %v457, %v458
        %v460 = vsel %vm407, %v399, 0.0
        %v461 = vadd.f32 %v459, %v460
        %v462 = vsel %vm407, %v400, 0.0
        %v463 = vadd.f32 %v461, %v462
        %v464 = vsel %vm407, %v401, 0.0
        %v465 = vadd.f32 %v463, %v464
        %v466 = vsel %vm407, %v402, 0.0
        %v467 = vadd.f32 %v465, %v466
        %v468 = vsel %vm407, %v403, 0.0
        %v469 = vadd.f32 %v467, %v468
        %v470 = vsel %vm407, %v404, 0.0
        %v471 = vadd.f32 %v469, %v470
        %v472 = vsel %vm407, %v405, 0.0
        %v473 = vadd.f32 %v471, %v472
        %v474 = vsel %vm407, %v406, 0.0
        %v475 = vadd.f32 %v473, %v474
        %v476 = vrot.slane %v475, 4
        %v477 = vadd.f32 %v475, %v476
        %v478 = vrot.slane %v477, 2
        %v479 = vadd.f32 %v477, %v478
        %v480 = vrot.slane %v479, 1
        %v481 = vadd.f32 %v479, %v480
        %v482 = vmax.f32 %v444, 1e-24
        %v483 = vmax.f32 %v481, 1e-24
        %v484 = vrsqrt.pop %v482
        %v485 = vrsqrt.pop %v483
        %v486 = vpack.c.bf16 %v344, %v343
        %v487 = vpack.c.bf16 %v346, %v345
        %v488 = vpack.c.bf16 %v348, %v347
        %v489 = vpack.c.bf16 %v350, %v349
        %v490 = vpack.c.bf16 %v352, %v351
        %v491 = vpack.c.bf16 %v354, %v353
        %v492 = vpack.c.bf16 %v356, %v355
        %v493 = vpack.c.bf16 %v358, %v357
        %v494 = vpack.c.bf16 %v360, %v359
        %v495 = vpack.c.bf16 %v362, %v361
        %v496 = vpack.c.bf16 %v364, %v363
        %v497 = vpack.c.bf16 %v366, %v365
        %v498 = vpack.c.bf16 %v368, %v367
        %v499 = vpack.c.bf16 %v370, %v369
        %v500 = vpack.c.bf16 %v372, %v371
        %v501 = vpack.c.bf16 %v374, %v373
        %v502 = vpack.c.bf16 %v484, %v484
        %v503 = vpack.c.bf16 %v485, %v485
        %v504 = vmul.bf16 %v486, %v502
        %v505 = vmul.bf16 %v487, %v502
        %v506 = vmul.bf16 %v488, %v502
        %v507 = vmul.bf16 %v489, %v502
        %v508 = vmul.bf16 %v490, %v502
        %v509 = vmul.bf16 %v491, %v502
        %v510 = vmul.bf16 %v492, %v502
        %v511 = vmul.bf16 %v493, %v502
        %v512 = vmul.bf16 %v494, %v503
        %v513 = vmul.bf16 %v495, %v503
        %v514 = vmul.bf16 %v496, %v503
        %v515 = vmul.bf16 %v497, %v503
        %v516 = vmul.bf16 %v498, %v503
        %v517 = vmul.bf16 %v499, %v503
        %v518 = vmul.bf16 %v500, %v503
        %v519 = vmul.bf16 %v501, %v503
        %v522 = vsel %vm407, %v504, 0
        %v525 = vsel %vm407, %v505, 0
        %v528 = vsel %vm407, %v506, 0
        %v531 = vsel %vm407, %v507, 0
        %v534 = vsel %vm407, %v508, 0
        %v537 = vsel %vm407, %v509, 0
        %v540 = vsel %vm407, %v510, 0
        %v543 = vsel %vm407, %v511, 0
        %v546 = vsel %vm407, %v512, 0
        %v549 = vsel %vm407, %v513, 0
        %v552 = vsel %vm407, %v514, 0
        %v555 = vsel %vm407, %v515, 0
        %v558 = vsel %vm407, %v516, 0
        %v561 = vsel %vm407, %v517, 0
        %v564 = vsel %vm407, %v518, 0
        %v567 = vsel %vm407, %v519, 0
        %v569 = vpack.c.bf16 %v341, %v341
        %v570 = vpack.c.bf16 %v342, %v342
        %571 = vmatprep.subr.bf16.mxu0 0
        %572 = vmatpush1.bf16.msra.mxu0 %v543
        %573 = vmatprep.subr.bf16.mxu0 0
        %574 = vmatpush1.bf16.msra.mxu0 %v540
        %575 = vmatprep.subr.bf16.mxu0 0
        %576 = vmatpush1.bf16.msra.mxu0 %v537
        %577 = vmatprep.subr.bf16.mxu0 0
        %578 = vmatpush1.bf16.msra.mxu0 %v534
        %579 = vmatprep.subr.bf16.mxu0 0
        %580 = vmatpush1.bf16.msra.mxu0 %v531
        %581 = vmatprep.subr.bf16.mxu0 0
        %582 = vmatpush1.bf16.msra.mxu0 %v528
        %583 = vmatprep.subr.bf16.mxu0 0
        %584 = vmatpush1.bf16.msra.mxu0 %v525
        %585 = vmatprep.subr.bf16.mxu0 0
        %586 = vmatpush1.bf16.msra.mxu0 %v522
        %587 = vmatprep.subr.bf16.mxu0 0
        %588 = vmatpush2.bf16.msra.mxu0 0
        %589 = vmatprep.subr.bf16.mxu0 0
        %590 = vmatpush2.bf16.msra.mxu0 0
        %591 = vmatprep.subr.bf16.mxu0 0
        %592 = vmatpush2.bf16.msra.mxu0 0
        %593 = vmatprep.subr.bf16.mxu0 0
        %594 = vmatpush2.bf16.msra.mxu0 0
        %595 = vmatprep.subr.bf16.mxu0 0
        %596 = vmatpush2.bf16.msra.mxu0 0
        %597 = vmatprep.subr.bf16.mxu0 0
        %598 = vmatpush2.bf16.msra.mxu0 0
        %599 = vmatprep.subr.bf16.mxu0 0
        %600 = vmatpush2.bf16.msra.mxu0 0
        %601 = vmatprep.subr.bf16.mxu0 0
        %602 = vmatpush2.bf16.msra.mxu0 0
        %603 = vmatprep.mubr.bf16.mxu0 0
        %604 = vmatmul.mubr.bf16.gmra.mxu0 %v569
        %v605 = vpop.f32.mrf.mxu0
        %v606 = vadd.f32 0.0, %v605
        %v607 = vpop.f32.mrf.mxu0
        %v608 = vpop.f32.mrf.mxu0
        %v609 = vpop.f32.mrf.mxu0
        %610 = vdwg.mxu0
        %611 = vmatprep.subr.bf16.mxu0 0
        %612 = vmatpush1.bf16.msra.mxu0 %v567
        %613 = vmatprep.subr.bf16.mxu0 0
        %614 = vmatpush1.bf16.msra.mxu0 %v564
        %615 = vmatprep.subr.bf16.mxu0 0
        %616 = vmatpush1.bf16.msra.mxu0 %v561
        %617 = vmatprep.subr.bf16.mxu0 0
        %618 = vmatpush1.bf16.msra.mxu0 %v558
        %619 = vmatprep.subr.bf16.mxu0 0
        %620 = vmatpush1.bf16.msra.mxu0 %v555
        %621 = vmatprep.subr.bf16.mxu0 0
        %622 = vmatpush1.bf16.msra.mxu0 %v552
        %623 = vmatprep.subr.bf16.mxu0 0
        %624 = vmatpush1.bf16.msra.mxu0 %v549
        %625 = vmatprep.subr.bf16.mxu0 0
        %626 = vmatpush1.bf16.msra.mxu0 %v546
        %627 = vmatprep.subr.bf16.mxu0 0
        %628 = vmatpush2.bf16.msra.mxu0 0
        %629 = vmatprep.subr.bf16.mxu0 0
        %630 = vmatpush2.bf16.msra.mxu0 0
        %631 = vmatprep.subr.bf16.mxu0 0
        %632 = vmatpush2.bf16.msra.mxu0 0
        %633 = vmatprep.subr.bf16.mxu0 0
        %634 = vmatpush2.bf16.msra.mxu0 0
        %635 = vmatprep.subr.bf16.mxu0 0
        %636 = vmatpush2.bf16.msra.mxu0 0
        %637 = vmatprep.subr.bf16.mxu0 0
        %638 = vmatpush2.bf16.msra.mxu0 0
        %639 = vmatprep.subr.bf16.mxu0 0
        %640 = vmatpush2.bf16.msra.mxu0 0
        %641 = vmatprep.subr.bf16.mxu0 0
        %642 = vmatpush2.bf16.msra.mxu0 0
        %643 = vmatprep.mubr.bf16.mxu0 0
        %644 = vmatmul.mubr.bf16.gmra.mxu0 %v570
        %v645 = vpop.f32.mrf.mxu0
        %v646 = vadd.f32 0.0, %v645
        %v647 = vpop.f32.mrf.mxu0
        %v648 = vpop.f32.mrf.mxu0
        %v649 = vpop.f32.mrf.mxu0
        %650 = vdwg.mxu0
        %651 = vst [vmem:[%s229] sm:$0xff] %v341
        %652 = vst [vmem:[%s229 + $0x8] sm:$0xff] %v342
        %653 = vst [vmem:[%s236] sm:$0xff] %v606
        %654 = vst [vmem:[%s236 + $0x8] sm:$0xff] %v646
        %s655 = sand.u32 %s108, 1
        %s656 = scalar_lea.sflag [#allocation3], %s655
        %s657 = sand.u32 %s108, 1
        %s658 = smul.addr %s657, 16
        %s659 = scalar_lea.vmem [#allocation2], %s658
        %s660 = sand.u32 %s134, 1
        %s661 = scalar_lea.sflag [#allocation5], %s660
        %s662 = sand.u32 %s134, 1
        %s663 = smul.addr %s662, 16
        %s664 = scalar_lea.vmem [#allocation4], %s663
        // Predicated region
        $region33: #{tpu_custom_call.1} parent=31 // pred_check
          %p665 = pneg %p118
        $region34: #{tpu_custom_call.1} parent=31 // pred_check_branch
          %667 = sbr.rel (%p665) target = $region36
        $region35: #{tpu_custom_call.1} parent=31 // pred_region
          %s668 = smul.u32 2, %s22
          %s670 = ssub.s32 256, 256
          %671 = vsyncadd %s656, %s670
          %s672 = smul.addr %s668, 128
          %s673 = scalar_lea.hbm %s3, %s672
          %s674 = sshll.u32 %s659, 4
          %s675 = int_to_ptr.vmem [resolvable:$true] %s674
          %680 = dma.vmem_to_hbm [thread:$0]  %s675, 256, %s673, %s656, 128, 128, 8
        $region36: #{tpu_custom_call.1} parent=31 // pred_fallthru
          _
        // Predicated region
        $region37: #{tpu_custom_call.1} parent=31 // pred_check
          %p681 = pneg %p144
        $region38: #{tpu_custom_call.1} parent=31 // pred_check_branch
          %683 = sbr.rel (%p681) target = $region40
        $region39: #{tpu_custom_call.1} parent=31 // pred_region
          %s684 = smul.u32 2, %s22
          %s686 = ssub.s32 256, 256
          %687 = vsyncadd %s661, %s686
          %s688 = smul.addr %s684, 128
          %s689 = scalar_lea.hbm %s4, %s688
          %s690 = sshll.u32 %s664, 4
          %s691 = int_to_ptr.vmem [resolvable:$true] %s690
          %696 = dma.vmem_to_hbm [thread:$0]  %s691, 256, %s689, %s661, 128, 128, 8
        $region40: #{tpu_custom_call.1} parent=31 // pred_fallthru
          _
      $region32: #{tpu_custom_call.1} parent=5 // pred_fallthru
        _
      %p697 = scmp.le.s32.totalorder 2, %s17
      // Predicated region
      $region41: #{tpu_custom_call.1} parent=5 // pred_check
        %p698 = pneg %p697
      $region42: #{tpu_custom_call.1} parent=5 // pred_check_branch
        %700 = sbr.rel (%p698) target = $region44
      $region43: #{tpu_custom_call.1} parent=5 // pred_region
        %s701 = ssub.s32 %s17, 2
        // Predicated region
        $region45: #{tpu_custom_call.1} parent=43 // pred_check
          %p702 = pneg %p124
        $region46: #{tpu_custom_call.1} parent=43 // pred_check_branch
          %704 = sbr.rel (%p702) target = $region48
        $region47: #{tpu_custom_call.1} parent=43 // pred_region
          %s705 = sand.u32 %s109, 1
          %s706 = scalar_lea.sflag [#allocation3], %s705
          %s707 = sand.u32 %s109, 1
          %s708 = smul.addr %s707, 16
          %s709 = scalar_lea.vmem [#allocation2], %s708
          %710 = dma.done %s706, 256
        $region48: #{tpu_custom_call.1} parent=43 // pred_fallthru
          _
        // Predicated region
        $region49: #{tpu_custom_call.1} parent=43 // pred_check
          %p711 = pneg %p150
        $region50: #{tpu_custom_call.1} parent=43 // pred_check_branch
          %713 = sbr.rel (%p711) target = $region52
        $region51: #{tpu_custom_call.1} parent=43 // pred_region
          %s714 = sand.u32 %s135, 1
          %s715 = scalar_lea.sflag [#allocation5], %s714
          %s716 = sand.u32 %s135, 1
          %s717 = smul.addr %s716, 16
          %s718 = scalar_lea.vmem [#allocation4], %s717
          %719 = dma.done %s715, 256
        $region52: #{tpu_custom_call.1} parent=43 // pred_fallthru
          _
      $region44: #{tpu_custom_call.1} parent=5 // pred_fallthru
        _
    $region6: #{tpu_custom_call.1} parent=1 // loop_footer
      %s21 = sadd.s32 1, %s17
    $region7: #{tpu_custom_call.1} parent=1 // loop_footer_branch
      %16 = sbr.rel target = $region3
    $region8: #{tpu_custom_call.1} parent=1 // loop_exit
      _
    %720 = vsyncpa [#allocation3], 1
    %s721 = scalar_lea.sflag [#allocation3], 1
    %722 = vsyncpa %s721, 1
    %723 = vsyncpa [#allocation5], 1
    %s724 = scalar_lea.sflag [#allocation5], 1
    %725 = vsyncpa %s724, 1

</llo_original>
